<compile_context>
chip_gen: v6e
topology: v6e:2x2x1
jax: 0.10.0
libtpu: 0.0.40
codegen_flags: <defaults>
</compile_context>

<pallas_src>
import jax
import jax.numpy as jnp
from jax.experimental import pallas as pl
from jax.experimental.pallas import tpu as pltpu


def mlp_kernel(x_ref, w_in_ref, b_in_ref, w_mid_ref, b_mid_ref,
               w_out_ref, b_out_ref, o_ref):
    # ----- input layer: Linear(4, U) + ReLU, on the VPU ---------------------
    # A K=4 matmul uses <2% of the MXU depth and adds a serial MXU push/drain
    # to the per-tile critical path; 4 broadcast multiply-accumulates on the
    # VPU are cheaper and keep the MXU free for the UxU chain.
    x = x_ref[...]                           # (4, Bt)  batch on lanes
    w_in = w_in_ref[...]                     # (U, 4)
    h = w_in[:, 0:1] * x[0:1, :]             # (U,1)*(1,Bt) -> (U,Bt)
    for k in range(1, 4):                    # static unroll
        h = h + w_in[:, k:k + 1] * x[k:k + 1, :]
    h = jnp.maximum(h + b_in_ref[...], 0.0)  # (U, Bt)

    # ----- middle layers: statically unrolled, W @ h on the MXU -------------
    num_layers = w_mid_ref.shape[0]
    for l in range(num_layers):              # static first-axis slices
        y = jnp.dot(w_mid_ref[l], h, preferred_element_type=jnp.float32)
        h = jnp.maximum(y + b_mid_ref[l], 0.0)          # (U, Bt)

    # ----- output layer: Linear(U, 1) as VPU mul + sublane reduction --------
    out = jnp.sum(h * w_out_ref[...], axis=0, keepdims=True) + b_out_ref[...]
    o_ref[...] = out.astype(o_ref.dtype)                # (1, Bt) lane-dense


def _choose_b_tile(B, target_cols=2048):
    """Pick a lane-aligned batch tile (multiple of 128).

    Pads B to a multiple of 128 first, then balances per-grid-step overhead
    (~0.35 us/step) against dead padded columns, and keeps >=2 grid steps when
    there is enough work so the 'parallel' grid axis can shard across the two
    v7x TensorCores (no-op on single-TC v5e/v6e).
    """
    n = pl.cdiv(B, 128)                       # 128-lane chunks required
    tmax = max(1, min(target_cols // 128, n))
    if n >= 2:                                # leave >=2 grid steps if possible
        tmax = min(tmax, pl.cdiv(n, 2))
    best = None
    for t in range(1, tmax + 1):
        steps = pl.cdiv(n, t)
        # cost ~ (per-step overhead) + (compute on padded columns), in chunk units
        cost = (steps + steps * t, -t)        # tie-break: fewer, larger tiles
        if best is None or cost < best[0]:
            best = (cost, t, steps)
    _, t, steps = best
    return t * 128, steps


def mlp_forward(x, w_in, b_in, w_mid, b_mid, w_out, b_out, *, b_tile=2048):
    """x: (B, 4). Weights in native PyTorch [out, in]; biases as columns."""
    B = x.shape[0]
    U = w_in.shape[0]
    L = w_mid.shape[0]

    b_tile, steps = _choose_b_tile(B, target_cols=b_tile)
    B_pad = b_tile * steps

    # layout plumbing in the wrapper: batch onto the lane axis, pad with zeros
    x_t = jnp.pad(x.T.astype(jnp.float32), ((0, 0), (0, B_pad - B)))

    # ---- VMEM scaling guard (matters on v7x: 64 MiB phys / 32 MiB scoped) ----
    itemsize = 4
    resident = 2 * itemsize * (w_in.size + b_in.size + w_mid.size
                               + b_mid.size + w_out.size + b_out.size)
    streamed = 2 * itemsize * (4 + 1) * b_tile     # x / out tiles, double-buffered
    temps = 2 * itemsize * U * b_tile              # activation temporaries
    vmem_est = int(resident + streamed + temps)
    vmem_limit = None
    if vmem_est > 24 * (1 << 20):
        # TODO(synk): on v7x prefer a per-layer (1,U,U) w_mid BlockSpec on an
        # extra 'arbitrary' grid axis instead of raising the limit further.
        vmem_limit = min(int(vmem_est * 5 // 4), 100 * (1 << 20))

    out_t = pl.pallas_call(
        mlp_kernel,
        out_shape=jax.ShapeDtypeStruct((1, B_pad), jnp.float32),
        grid_spec=pltpu.PrefetchScalarGridSpec(
            num_scalar_prefetch=0,
            grid=(steps,),
            in_specs=[
                pl.BlockSpec((4, b_tile), lambda i: (0, i)),    # x^T tile
                pl.BlockSpec((U, 4), lambda i: (0, 0)),         # w_in (resident)
                pl.BlockSpec((U, 1), lambda i: (0, 0)),         # b_in
                pl.BlockSpec((L, U, U), lambda i: (0, 0, 0)),   # w_mid stack
                pl.BlockSpec((L, U, 1), lambda i: (0, 0, 0)),   # b_mid stack
                pl.BlockSpec((U, 1), lambda i: (0, 0)),         # w_out column
                pl.BlockSpec((1, 1), lambda i: (0, 0)),         # b_out
            ],
            out_specs=pl.BlockSpec((1, b_tile), lambda i: (0, i)),
        ),
        compiler_params=pltpu.CompilerParams(
            dimension_semantics=("parallel",),
            vmem_limit_bytes=vmem_limit),
    )(x_t, w_in, b_in, w_mid, b_mid, w_out, b_out)

    return out_t[0, :B].reshape(B, 1)


def init_params(key, num_layer, num_unit):
    """Deterministic init mirroring torch.nn.Linear; weights kept [out, in]."""
    ks = jax.random.split(key, 2 * (num_layer + 2))
    ki = iter(range(len(ks)))

    def linear(in_f, out_f):
        bound = 1.0 / jnp.sqrt(in_f)
        w = jax.random.uniform(ks[next(ki)], (out_f, in_f), jnp.float32,
                               -bound, bound)
        b = jax.random.uniform(ks[next(ki)], (out_f,), jnp.float32,
                               -bound, bound)
        return w, b

    w_in, b_in = linear(4, num_unit)                       # (U,4), (U,)
    mids = [linear(num_unit, num_unit) for _ in range(num_layer)]
    w_out, b_out = linear(num_unit, 1)                     # (1,U), (1,)

    b_in = b_in.reshape(num_unit, 1)                       # (U, 1)
    w_mid = jnp.stack([w for (w, _) in mids], axis=0)      # (L, U, U) [out,in]
    b_mid = jnp.stack([b.reshape(num_unit, 1) for (_, b) in mids], axis=0)
    w_out_col = w_out.T                                    # (U, 1)
    b_out = b_out.reshape(1, 1)                            # (1, 1)
    return w_in, b_in, w_mid, b_mid, w_out_col, b_out


def reference_forward(x, w_in, b_in, w_mid, b_mid, w_out_col, b_out):
    h = jnp.maximum(x @ w_in.T + b_in[:, 0], 0.0)
    for l in range(w_mid.shape[0]):
        h = jnp.maximum(h @ w_mid[l].T + b_mid[l, :, 0], 0.0)
    return h @ w_out_col + b_out[0]


if __name__ == "__main__":
    NUM_LAYER = 3
    NUM_UNIT = 32
    BATCH = 8

    key = jax.random.PRNGKey(0)
    k_x, k_p = jax.random.split(key)
    x = jax.random.normal(k_x, (BATCH, 4), jnp.float32)
    params = init_params(k_p, NUM_LAYER, NUM_UNIT)

    out = mlp_forward(x, *params)
    out = jax.block_until_ready(out)

    ref = reference_forward(x, *params)
    assert out.shape == (BATCH, 1)
    assert jnp.allclose(out, ref, atol=1e-5, rtol=1e-5)
    print("KERNEL_OK")
</pallas_src>

<mosaic_0001>
module attributes {stable_mosaic.version = 11 : i64} {
  func.func @mlp_kernel(%arg0: i32, %arg1: memref<4x128xf32, #tpu.memory_space<vmem>>, %arg2: memref<32x4xf32, #tpu.memory_space<vmem>>, %arg3: memref<32x1xf32, #tpu.memory_space<vmem>>, %arg4: memref<3x32x32xf32, #tpu.memory_space<vmem>>, %arg5: memref<3x32x1xf32, #tpu.memory_space<vmem>>, %arg6: memref<32x1xf32, #tpu.memory_space<vmem>>, %arg7: memref<1x1xf32, #tpu.memory_space<vmem>>, %arg8: memref<1x128xf32, #tpu.memory_space<vmem>>) attributes {dimension_semantics = [#tpu.dimension_semantics<parallel>], iteration_bounds = array<i64: 1>, scalar_prefetch = 0 : i64, scratch_operands = 0 : i64, tpu.core_type = #tpu.core_type<tc>, window_params = [{transform_indices = @transform_0, window_bounds = array<i64: 4, 128>}, {pipeline_mode = #tpu.pipeline_mode<synchronous>, transform_indices = @transform_1, window_bounds = array<i64: 32, 4>}, {pipeline_mode = #tpu.pipeline_mode<synchronous>, transform_indices = @transform_2, window_bounds = array<i64: 32, 1>}, {pipeline_mode = #tpu.pipeline_mode<synchronous>, transform_indices = @transform_3, window_bounds = array<i64: 3, 32, 32>}, {pipeline_mode = #tpu.pipeline_mode<synchronous>, transform_indices = @transform_4, window_bounds = array<i64: 3, 32, 1>}, {pipeline_mode = #tpu.pipeline_mode<synchronous>, transform_indices = @transform_5, window_bounds = array<i64: 32, 1>}, {pipeline_mode = #tpu.pipeline_mode<synchronous>, transform_indices = @transform_6, window_bounds = array<i64: 1, 1>}, {transform_indices = @transform_7, window_bounds = array<i64: 1, 128>}]} {
    %c0 = arith.constant 0 : index
    %c0_0 = arith.constant 0 : index
    %0 = vector.load %arg1[%c0, %c0_0] : memref<4x128xf32, #tpu.memory_space<vmem>>, vector<4x128xf32>
    %c0_1 = arith.constant 0 : index
    %c0_2 = arith.constant 0 : index
    %1 = vector.load %arg2[%c0_1, %c0_2] : memref<32x4xf32, #tpu.memory_space<vmem>>, vector<32x4xf32>
    %2 = vector.extract_strided_slice %1 {offsets = [0, 0], sizes = [32, 1], strides = [1, 1]} : vector<32x4xf32> to vector<32x1xf32>
    %3 = vector.extract_strided_slice %0 {offsets = [0, 0], sizes = [1, 128], strides = [1, 1]} : vector<4x128xf32> to vector<1x128xf32>
    %4 = vector.broadcast %2 : vector<32x1xf32> to vector<32x128xf32>
    %5 = vector.broadcast %3 : vector<1x128xf32> to vector<32x128xf32>
    %6 = arith.mulf %4, %5 : vector<32x128xf32>
    %7 = vector.extract_strided_slice %1 {offsets = [0, 1], sizes = [32, 1], strides = [1, 1]} : vector<32x4xf32> to vector<32x1xf32>
    %8 = vector.extract_strided_slice %0 {offsets = [1, 0], sizes = [1, 128], strides = [1, 1]} : vector<4x128xf32> to vector<1x128xf32>
    %9 = vector.broadcast %7 : vector<32x1xf32> to vector<32x128xf32>
    %10 = vector.broadcast %8 : vector<1x128xf32> to vector<32x128xf32>
    %11 = arith.mulf %9, %10 : vector<32x128xf32>
    %12 = arith.addf %6, %11 : vector<32x128xf32>
    %13 = vector.extract_strided_slice %1 {offsets = [0, 2], sizes = [32, 1], strides = [1, 1]} : vector<32x4xf32> to vector<32x1xf32>
    %14 = vector.extract_strided_slice %0 {offsets = [2, 0], sizes = [1, 128], strides = [1, 1]} : vector<4x128xf32> to vector<1x128xf32>
    %15 = vector.broadcast %13 : vector<32x1xf32> to vector<32x128xf32>
    %16 = vector.broadcast %14 : vector<1x128xf32> to vector<32x128xf32>
    %17 = arith.mulf %15, %16 : vector<32x128xf32>
    %18 = arith.addf %12, %17 : vector<32x128xf32>
    %19 = vector.extract_strided_slice %1 {offsets = [0, 3], sizes = [32, 1], strides = [1, 1]} : vector<32x4xf32> to vector<32x1xf32>
    %20 = vector.extract_strided_slice %0 {offsets = [3, 0], sizes = [1, 128], strides = [1, 1]} : vector<4x128xf32> to vector<1x128xf32>
    %21 = vector.broadcast %19 : vector<32x1xf32> to vector<32x128xf32>
    %22 = vector.broadcast %20 : vector<1x128xf32> to vector<32x128xf32>
    %23 = arith.mulf %21, %22 : vector<32x128xf32>
    %24 = arith.addf %18, %23 : vector<32x128xf32>
    %c0_3 = arith.constant 0 : index
    %c0_4 = arith.constant 0 : index
    %25 = vector.load %arg3[%c0_3, %c0_4] : memref<32x1xf32, #tpu.memory_space<vmem>>, vector<32x1xf32>
    %26 = vector.broadcast %25 : vector<32x1xf32> to vector<32x128xf32>
    %27 = arith.addf %24, %26 : vector<32x128xf32>
    %cst = arith.constant 0.000000e+00 : f32
    %28 = vector.broadcast %cst : f32 to vector<32x128xf32>
    %29 = arith.maximumf %27, %28 : vector<32x128xf32>
    %c0_5 = arith.constant 0 : index
    %c0_6 = arith.constant 0 : index
    %c0_7 = arith.constant 0 : index
    %30 = vector.load %arg4[%c0_5, %c0_6, %c0_7] : memref<3x32x32xf32, #tpu.memory_space<vmem>>, vector<1x32x32xf32>
    %31 = vector.shape_cast %30 : vector<1x32x32xf32> to vector<32x32xf32>
    %cst_8 = arith.constant dense<0.000000e+00> : vector<32x128xf32>
    %32 = tpu.matmul %31, %29, %cst_8 {dimension_numbers = #tpu.dot_dimension_numbers<[1], [0], [0], [1], [0, 0, 1, 1], [], []>} : vector<32x32xf32>, vector<32x128xf32>, vector<32x128xf32> -> vector<32x128xf32>
    %c0_9 = arith.constant 0 : index
    %c0_10 = arith.constant 0 : index
    %c0_11 = arith.constant 0 : index
    %33 = vector.load %arg5[%c0_9, %c0_10, %c0_11] : memref<3x32x1xf32, #tpu.memory_space<vmem>>, vector<1x32x1xf32>
    %34 = vector.shape_cast %33 : vector<1x32x1xf32> to vector<32x1xf32>
    %35 = vector.broadcast %34 : vector<32x1xf32> to vector<32x128xf32>
    %36 = arith.addf %32, %35 : vector<32x128xf32>
    %cst_12 = arith.constant 0.000000e+00 : f32
    %37 = vector.broadcast %cst_12 : f32 to vector<32x128xf32>
    %38 = arith.maximumf %36, %37 : vector<32x128xf32>
    %c1 = arith.constant 1 : index
    %c0_13 = arith.constant 0 : index
    %c0_14 = arith.constant 0 : index
    %39 = vector.load %arg4[%c1, %c0_13, %c0_14] : memref<3x32x32xf32, #tpu.memory_space<vmem>>, vector<1x32x32xf32>
    %40 = vector.shape_cast %39 : vector<1x32x32xf32> to vector<32x32xf32>
    %cst_15 = arith.constant dense<0.000000e+00> : vector<32x128xf32>
    %41 = tpu.matmul %40, %38, %cst_15 {dimension_numbers = #tpu.dot_dimension_numbers<[1], [0], [0], [1], [0, 0, 1, 1], [], []>} : vector<32x32xf32>, vector<32x128xf32>, vector<32x128xf32> -> vector<32x128xf32>
    %c1_16 = arith.constant 1 : index
    %c0_17 = arith.constant 0 : index
    %c0_18 = arith.constant 0 : index
    %42 = vector.load %arg5[%c1_16, %c0_17, %c0_18] : memref<3x32x1xf32, #tpu.memory_space<vmem>>, vector<1x32x1xf32>
    %43 = vector.shape_cast %42 : vector<1x32x1xf32> to vector<32x1xf32>
    %44 = vector.broadcast %43 : vector<32x1xf32> to vector<32x128xf32>
    %45 = arith.addf %41, %44 : vector<32x128xf32>
    %cst_19 = arith.constant 0.000000e+00 : f32
    %46 = vector.broadcast %cst_19 : f32 to vector<32x128xf32>
    %47 = arith.maximumf %45, %46 : vector<32x128xf32>
    %c2 = arith.constant 2 : index
    %c0_20 = arith.constant 0 : index
    %c0_21 = arith.constant 0 : index
    %48 = vector.load %arg4[%c2, %c0_20, %c0_21] : memref<3x32x32xf32, #tpu.memory_space<vmem>>, vector<1x32x32xf32>
    %49 = vector.shape_cast %48 : vector<1x32x32xf32> to vector<32x32xf32>
    %cst_22 = arith.constant dense<0.000000e+00> : vector<32x128xf32>
    %50 = tpu.matmul %49, %47, %cst_22 {dimension_numbers = #tpu.dot_dimension_numbers<[1], [0], [0], [1], [0, 0, 1, 1], [], []>} : vector<32x32xf32>, vector<32x128xf32>, vector<32x128xf32> -> vector<32x128xf32>
    %c2_23 = arith.constant 2 : index
    %c0_24 = arith.constant 0 : index
    %c0_25 = arith.constant 0 : index
    %51 = vector.load %arg5[%c2_23, %c0_24, %c0_25] : memref<3x32x1xf32, #tpu.memory_space<vmem>>, vector<1x32x1xf32>
    %52 = vector.shape_cast %51 : vector<1x32x1xf32> to vector<32x1xf32>
    %53 = vector.broadcast %52 : vector<32x1xf32> to vector<32x128xf32>
    %54 = arith.addf %50, %53 : vector<32x128xf32>
    %cst_26 = arith.constant 0.000000e+00 : f32
    %55 = vector.broadcast %cst_26 : f32 to vector<32x128xf32>
    %56 = arith.maximumf %54, %55 : vector<32x128xf32>
    %c0_27 = arith.constant 0 : index
    %c0_28 = arith.constant 0 : index
    %57 = vector.load %arg6[%c0_27, %c0_28] : memref<32x1xf32, #tpu.memory_space<vmem>>, vector<32x1xf32>
    %58 = vector.broadcast %57 : vector<32x1xf32> to vector<32x128xf32>
    %59 = arith.mulf %56, %58 : vector<32x128xf32>
    %cst_29 = arith.constant dense<0.000000e+00> : vector<128xf32>
    %60 = vector.multi_reduction <add>, %59, %cst_29 [0] : vector<32x128xf32> to vector<128xf32>
    %61 = vector.shape_cast %60 : vector<128xf32> to vector<1x128xf32>
    %c0_30 = arith.constant 0 : index
    %c0_31 = arith.constant 0 : index
    %62 = vector.load %arg7[%c0_30, %c0_31] : memref<1x1xf32, #tpu.memory_space<vmem>>, vector<1x1xf32>
    %63 = vector.broadcast %62 : vector<1x1xf32> to vector<1x128xf32>
    %64 = arith.addf %61, %63 : vector<1x128xf32>
    %c0_32 = arith.constant 0 : index
    %c0_33 = arith.constant 0 : index
    %65 = vector.load %arg8[%c0_32, %c0_33] : memref<1x128xf32, #tpu.memory_space<vmem>>, vector<1x128xf32>
    tpu.vector_store %arg8[%c0_32, %c0_33], %64 {strides = array<i32>} : memref<1x128xf32, #tpu.memory_space<vmem>>, vector<1x128xf32>,
    return
  }
  func.func @transform_0(%arg0: i32) -> (i32, i32) {
    %c0_i32 = arith.constant 0 : i32
    %c0_i32_0 = arith.constant 0 : i32
    return %c0_i32, %arg0 : i32, i32
  }
  func.func @transform_1(%arg0: i32) -> (i32, i32) {
    %c0_i32 = arith.constant 0 : i32
    %c0_i32_0 = arith.constant 0 : i32
    %c0_i32_1 = arith.constant 0 : i32
    return %c0_i32, %c0_i32_0 : i32, i32
  }
  func.func @transform_2(%arg0: i32) -> (i32, i32) {
    %c0_i32 = arith.constant 0 : i32
    %c0_i32_0 = arith.constant 0 : i32
    %c0_i32_1 = arith.constant 0 : i32
    return %c0_i32, %c0_i32_0 : i32, i32
  }
  func.func @transform_3(%arg0: i32) -> (i32, i32, i32) {
    %c0_i32 = arith.constant 0 : i32
    %c0_i32_0 = arith.constant 0 : i32
    %c0_i32_1 = arith.constant 0 : i32
    %c0_i32_2 = arith.constant 0 : i32
    return %c0_i32, %c0_i32_0, %c0_i32_1 : i32, i32, i32
  }
  func.func @transform_4(%arg0: i32) -> (i32, i32, i32) {
    %c0_i32 = arith.constant 0 : i32
    %c0_i32_0 = arith.constant 0 : i32
    %c0_i32_1 = arith.constant 0 : i32
    %c0_i32_2 = arith.constant 0 : i32
    return %c0_i32, %c0_i32_0, %c0_i32_1 : i32, i32, i32
  }
  func.func @transform_5(%arg0: i32) -> (i32, i32) {
    %c0_i32 = arith.constant 0 : i32
    %c0_i32_0 = arith.constant 0 : i32
    %c0_i32_1 = arith.constant 0 : i32
    return %c0_i32, %c0_i32_0 : i32, i32
  }
  func.func @transform_6(%arg0: i32) -> (i32, i32) {
    %c0_i32 = arith.constant 0 : i32
    %c0_i32_0 = arith.constant 0 : i32
    %c0_i32_1 = arith.constant 0 : i32
    return %c0_i32, %c0_i32_0 : i32, i32
  }
  func.func @transform_7(%arg0: i32) -> (i32, i32) {
    %c0_i32 = arith.constant 0 : i32
    %c0_i32_0 = arith.constant 0 : i32
    return %c0_i32, %arg0 : i32, i32
  }
}

</mosaic_0001>

<llo_original>
// kernel: tpu_custom_call.1
$region0: #{tpu_custom_call.1}
  #allocation0 [shape = 'u32[]', space=smem, size = 0x4, offset = 0x4, fixed_abs, tag = 'smem constant byte address 0x4 - core index']
  #allocation1 [shape = 'u32[144,128]{1,0:T(1,128)}', space=vmem, size = 0x12000, scoped, tag = 'internal scratch']
  #allocation2 [shape = 'f32[1,1]{1,0:T(1,128)S(1)}', space=vmem, size = 0x200, scoped, tag = 'scoped memory for tpu_custom_call.1']
  %s0 = inlined_call_operand.vmem [shape: f32[4,128], index: 0, kind: input, shape index: {}]
  %s1 = inlined_call_operand.vmem [shape: f32[32,4], index: 1, kind: input, shape index: {}]
  %s2 = inlined_call_operand.vmem [shape: f32[32,1], index: 2, kind: input, shape index: {}]
  %s3 = inlined_call_operand.vmem [shape: f32[3,32,32], index: 3, kind: input, shape index: {}]
  %s4 = inlined_call_operand.vmem [shape: f32[3,32,1], index: 4, kind: input, shape index: {}]
  %s5 = inlined_call_operand.vmem [shape: f32[32,1], index: 5, kind: input, shape index: {}]
  %s6 = inlined_call_operand.<no memory space> [shape: f32[1,1], index: 6, kind: input, shape index: {}]
  %s7 = inlined_call_operand.hbm [shape: f32[1,128], index: 7, kind: output, shape index: {}]
  %s8 = sld [smem:[#allocation0]]
  $region38: #{tpu_custom_call.1} parent=0
    _
  %s10 = ssub.s32 1, %s8
  %s11 = scalar_select 0, %s10, %s8
  %v12 = vstv %s6
  %13 = vst [vmem:[#allocation2] sm:$0x1] %v12
  $region1: #{tpu_custom_call.1} parent=0
    #allocation3 [shape = 'u8[512]{0}', space=vmem, size = 0x400, scoped, tag = 'output window, operand 0, single buffered']
    #allocation4 [shape = 's32[1]{0}', space=sflag, size = 0x4, scoped, tag = 'scoped memory for tpu_custom_call.1']
    %14 = vsyncpa [#allocation4], 0
    // Predicated region
    $region2: #{tpu_custom_call.1} parent=1 // pred_check
      _
    $region3: #{tpu_custom_call.1} parent=1 // pred_check_branch
      %16 = sbr.rel (0) target = $region5
    $region4: #{tpu_custom_call.1} parent=1 // pred_region
      _
    $region5: #{tpu_custom_call.1} parent=1 // pred_fallthru
      _
    // Predicated region
    $region6: #{tpu_custom_call.1} parent=1 // pred_check
      _
    $region7: #{tpu_custom_call.1} parent=1 // pred_check_branch
      %18 = sbr.rel (0) target = $region9
    $region8: #{tpu_custom_call.1} parent=1 // pred_region
      _
    $region9: #{tpu_custom_call.1} parent=1 // pred_fallthru
      _
    // Predicated region
    $region10: #{tpu_custom_call.1} parent=1 // pred_check
      _
    $region11: #{tpu_custom_call.1} parent=1 // pred_check_branch
      %20 = sbr.rel (0) target = $region13
    $region12: #{tpu_custom_call.1} parent=1 // pred_region
      _
    $region13: #{tpu_custom_call.1} parent=1 // pred_fallthru
      _
    // Predicated region
    $region14: #{tpu_custom_call.1} parent=1 // pred_check
      _
    $region15: #{tpu_custom_call.1} parent=1 // pred_check_branch
      %22 = sbr.rel (0) target = $region17
    $region16: #{tpu_custom_call.1} parent=1 // pred_region
      _
    $region17: #{tpu_custom_call.1} parent=1 // pred_fallthru
      _
    // Predicated region
    $region18: #{tpu_custom_call.1} parent=1 // pred_check
      _
    $region19: #{tpu_custom_call.1} parent=1 // pred_check_branch
      %24 = sbr.rel (0) target = $region21
    $region20: #{tpu_custom_call.1} parent=1 // pred_region
      _
    $region21: #{tpu_custom_call.1} parent=1 // pred_fallthru
      _
    // Predicated region
    $region22: #{tpu_custom_call.1} parent=1 // pred_check
      _
    $region23: #{tpu_custom_call.1} parent=1 // pred_check_branch
      %26 = sbr.rel (0) target = $region25
    $region24: #{tpu_custom_call.1} parent=1 // pred_region
      _
    $region25: #{tpu_custom_call.1} parent=1 // pred_fallthru
      _
    // Predicated region
    $region26: #{tpu_custom_call.1} parent=1 // pred_check
      _
    $region27: #{tpu_custom_call.1} parent=1 // pred_check_branch
      %28 = sbr.rel (0) target = $region29
    $region28: #{tpu_custom_call.1} parent=1 // pred_region
      _
    $region29: #{tpu_custom_call.1} parent=1 // pred_fallthru
      _
    %v29 = vld [vmem:[%s0] sm:$0xf]
    %v30 = vld [vmem:[%s1] sm:$0xff]
    %v31 = vld [vmem:[%s1 + $0x8] sm:$0xff]
    %v32 = vld [vmem:[%s1 + $0x10] sm:$0xff]
    %v33 = vld [vmem:[%s1 + $0x18] sm:$0xff]
    %35 = vset.pattern.permute.xlu0 0
    %36 = vperm.xlu0 %35, %v30
    %v37 = vpop.permute.xlu0 %36
    %40 = vset.pattern.permute.xlu0 0
    %41 = vperm.xlu0 %40, %v31
    %v42 = vpop.permute.xlu0 %41
    %45 = vset.pattern.permute.xlu0 0
    %46 = vperm.xlu0 %45, %v32
    %v47 = vpop.permute.xlu0 %46
    %50 = vset.pattern.permute.xlu0 0
    %51 = vperm.xlu0 %50, %v33
    %v52 = vpop.permute.xlu0 %51
    %v54 = vlaneseq
    %v55 = vshrl.u32 %v54, 7
    %v56 = vsub.s32 0, %v55
    %v57 = vrot.slane %v29, %v56
    %v58 = vmul.f32 %v37, %v57
    %v59 = vmul.f32 %v42, %v57
    %v60 = vmul.f32 %v47, %v57
    %v61 = vmul.f32 %v52, %v57
    %62 = vset.pattern.permute.xlu0 1
    %63 = vperm.xlu0 %62, %v30
    %v64 = vpop.permute.xlu0 %63
    %66 = vset.pattern.permute.xlu0 1
    %67 = vperm.xlu0 %66, %v31
    %v68 = vpop.permute.xlu0 %67
    %70 = vset.pattern.permute.xlu0 1
    %71 = vperm.xlu0 %70, %v32
    %v72 = vpop.permute.xlu0 %71
    %74 = vset.pattern.permute.xlu0 1
    %75 = vperm.xlu0 %74, %v33
    %v76 = vpop.permute.xlu0 %75
    %v78 = vlaneseq
    %v79 = vshrl.u32 %v78, 7
    %v80 = vsub.s32 1, %v79
    %v81 = vrot.slane %v29, %v80
    %v82 = vmul.f32 %v64, %v81
    %v83 = vmul.f32 %v68, %v81
    %v84 = vmul.f32 %v72, %v81
    %v85 = vmul.f32 %v76, %v81
    %v86 = vadd.f32 %v58, %v82
    %v87 = vadd.f32 %v59, %v83
    %v88 = vadd.f32 %v60, %v84
    %v89 = vadd.f32 %v61, %v85
    %90 = vset.pattern.permute.xlu0 2
    %91 = vperm.xlu0 %90, %v30
    %v92 = vpop.permute.xlu0 %91
    %94 = vset.pattern.permute.xlu0 2
    %95 = vperm.xlu0 %94, %v31
    %v96 = vpop.permute.xlu0 %95
    %98 = vset.pattern.permute.xlu0 2
    %99 = vperm.xlu0 %98, %v32
    %v100 = vpop.permute.xlu0 %99
    %102 = vset.pattern.permute.xlu0 2
    %103 = vperm.xlu0 %102, %v33
    %v104 = vpop.permute.xlu0 %103
    %v106 = vlaneseq
    %v107 = vshrl.u32 %v106, 7
    %v108 = vsub.s32 2, %v107
    %v109 = vrot.slane %v29, %v108
    %v110 = vmul.f32 %v92, %v109
    %v111 = vmul.f32 %v96, %v109
    %v112 = vmul.f32 %v100, %v109
    %v113 = vmul.f32 %v104, %v109
    %v114 = vadd.f32 %v86, %v110
    %v115 = vadd.f32 %v87, %v111
    %v116 = vadd.f32 %v88, %v112
    %v117 = vadd.f32 %v89, %v113
    %118 = vset.pattern.permute.xlu0 3
    %119 = vperm.xlu0 %118, %v30
    %v120 = vpop.permute.xlu0 %119
    %122 = vset.pattern.permute.xlu0 3
    %123 = vperm.xlu0 %122, %v31
    %v124 = vpop.permute.xlu0 %123
    %126 = vset.pattern.permute.xlu0 3
    %127 = vperm.xlu0 %126, %v32
    %v128 = vpop.permute.xlu0 %127
    %130 = vset.pattern.permute.xlu0 3
    %131 = vperm.xlu0 %130, %v33
    %v132 = vpop.permute.xlu0 %131
    %v134 = vlaneseq
    %v135 = vshrl.u32 %v134, 7
    %v136 = vsub.s32 3, %v135
    %v137 = vrot.slane %v29, %v136
    %v138 = vmul.f32 %v120, %v137
    %v139 = vmul.f32 %v124, %v137
    %v140 = vmul.f32 %v128, %v137
    %v141 = vmul.f32 %v132, %v137
    %v142 = vadd.f32 %v114, %v138
    %v143 = vadd.f32 %v115, %v139
    %v144 = vadd.f32 %v116, %v140
    %v145 = vadd.f32 %v117, %v141
    %v146 = vld [vmem:[%s2] sm:$0xff]
    %v147 = vld [vmem:[%s2 + $0x8] sm:$0xff]
    %v148 = vld [vmem:[%s2 + $0x10] sm:$0xff]
    %v149 = vld [vmem:[%s2 + $0x18] sm:$0xff]
    %151 = vset.pattern.permute.xlu0 0
    %152 = vperm.xlu0 %151, %v146
    %v153 = vpop.permute.xlu0 %152
    %156 = vset.pattern.permute.xlu0 0
    %157 = vperm.xlu0 %156, %v147
    %v158 = vpop.permute.xlu0 %157
    %161 = vset.pattern.permute.xlu0 0
    %162 = vperm.xlu0 %161, %v148
    %v163 = vpop.permute.xlu0 %162
    %166 = vset.pattern.permute.xlu0 0
    %167 = vperm.xlu0 %166, %v149
    %v168 = vpop.permute.xlu0 %167
    %v170 = vadd.f32 %v142, %v153
    %v171 = vadd.f32 %v143, %v158
    %v172 = vadd.f32 %v144, %v163
    %v173 = vadd.f32 %v145, %v168
    %v174 = vmax.f32 %v170, 0.0
    %v175 = vmax.f32 %v171, 0.0
    %v176 = vmax.f32 %v172, 0.0
    %v177 = vmax.f32 %v173, 0.0
    %v178 = vld [vmem:[%s3] sm:$0xff]
    %v179 = vld [vmem:[%s3 + $0x8] sm:$0xff]
    %v180 = vld [vmem:[%s3 + $0x10] sm:$0xff]
    %v181 = vld [vmem:[%s3 + $0x18] sm:$0xff]
    %v182 = vld [vmem:[%s4] sm:$0xff]
    %v183 = vld [vmem:[%s4 + $0x8] sm:$0xff]
    %v184 = vld [vmem:[%s4 + $0x10] sm:$0xff]
    %v185 = vld [vmem:[%s4 + $0x18] sm:$0xff]
    %187 = vset.pattern.permute.xlu0 0
    %188 = vperm.xlu0 %187, %v182
    %v189 = vpop.permute.xlu0 %188
    %192 = vset.pattern.permute.xlu0 0
    %193 = vperm.xlu0 %192, %v183
    %v194 = vpop.permute.xlu0 %193
    %197 = vset.pattern.permute.xlu0 0
    %198 = vperm.xlu0 %197, %v184
    %v199 = vpop.permute.xlu0 %198
    %202 = vset.pattern.permute.xlu0 0
    %203 = vperm.xlu0 %202, %v185
    %v204 = vpop.permute.xlu0 %203
    %vm206 = vcmask 261120
    %v208 = vsel %vm206, %v178, 0
    %v211 = vsel %vm206, %v179, 0
    %v214 = vsel %vm206, %v180, 0
    %v217 = vsel %vm206, %v181, 0
    %219 = vmatprep.subr.mxu0 0.0
    %220 = vmatpush1.msra.mxu0 0.0
    %221 = vmatprep.subr.mxu0 0.0
    %222 = vmatpush1.msra.mxu0 0.0
    %223 = vmatprep.subr.mxu0 0.0
    %224 = vmatpush1.msra.mxu0 0.0
    %225 = vmatprep.subr.mxu0 0.0
    %226 = vmatpush1.msra.mxu0 0.0
    %227 = vmatprep.subr.mxu0 0.0
    %228 = vmatpush1.msra.mxu0 0.0
    %229 = vmatprep.subr.mxu0 0.0
    %230 = vmatpush1.msra.mxu0 0.0
    %231 = vmatprep.subr.mxu0 0.0
    %232 = vmatpush1.msra.mxu0 0.0
    %233 = vmatprep.subr.mxu0 0.0
    %234 = vmatpush1.msra.mxu0 0.0
    %235 = vmatprep.subr.mxu0 0.0
    %236 = vmatpush1.msra.mxu0 0.0
    %237 = vmatprep.subr.mxu0 0.0
    %238 = vmatpush1.msra.mxu0 0.0
    %239 = vmatprep.subr.mxu0 0.0
    %240 = vmatpush1.msra.mxu0 0.0
    %241 = vmatprep.subr.mxu0 0.0
    %242 = vmatpush1.msra.mxu0 0.0
    %243 = vmatprep.subr.mxu0 0.0
    %244 = vmatpush1.msra.mxu0 %v177
    %245 = vmatprep.subr.mxu0 0.0
    %246 = vmatpush1.msra.mxu0 %v176
    %247 = vmatprep.subr.mxu0 0.0
    %248 = vmatpush1.msra.mxu0 %v175
    %249 = vmatprep.subr.mxu0 0.0
    %250 = vmatpush1.msra.mxu0 %v174
    %251 = vmatprep.subr.mxu0 0.0
    %252 = vmatpush2.msra.mxu0 0.0
    %253 = vmatprep.subr.mxu0 0.0
    %254 = vmatpush2.msra.mxu0 0.0
    %255 = vmatprep.subr.mxu0 0.0
    %256 = vmatpush2.msra.mxu0 0.0
    %257 = vmatprep.subr.mxu0 0.0
    %258 = vmatpush2.msra.mxu0 0.0
    %259 = vmatprep.subr.mxu0 0.0
    %260 = vmatpush2.msra.mxu0 0.0
    %261 = vmatprep.subr.mxu0 0.0
    %262 = vmatpush2.msra.mxu0 0.0
    %263 = vmatprep.subr.mxu0 0.0
    %264 = vmatpush2.msra.mxu0 0.0
    %265 = vmatprep.subr.mxu0 0.0
    %266 = vmatpush2.msra.mxu0 0.0
    %267 = vmatprep.subr.mxu0 0.0
    %268 = vmatpush2.msra.mxu0 0.0
    %269 = vmatprep.subr.mxu0 0.0
    %270 = vmatpush2.msra.mxu0 0.0
    %271 = vmatprep.subr.mxu0 0.0
    %272 = vmatpush2.msra.mxu0 0.0
    %273 = vmatprep.subr.mxu0 0.0
    %274 = vmatpush2.msra.mxu0 0.0
    %275 = vmatprep.subr.mxu0 0.0
    %276 = vmatpush2.msra.mxu0 0.0
    %277 = vmatprep.subr.mxu0 0.0
    %278 = vmatpush2.msra.mxu0 0.0
    %279 = vmatprep.subr.mxu0 0.0
    %280 = vmatpush2.msra.mxu0 0.0
    %281 = vmatprep.subr.mxu0 0.0
    %282 = vmatpush2.msra.mxu0 0.0
    %283 = vmatprep.mubr.f32.mxu0 0.0
    %284 = vmatmul.mubr.f32.gmra.mxu0 %v208
    %v285 = vpop.f32.mrf.mxu0
    %v286 = vadd.f32 %v189, %v285
    %v287 = vpop.f32.mrf.mxu0
    %288 = vmatprep.mubr.f32.mxu0 0.0
    %289 = vmatmul.mubr.f32.gmra.mxu0 %v211
    %v290 = vpop.f32.mrf.mxu0
    %v291 = vadd.f32 %v194, %v290
    %v292 = vpop.f32.mrf.mxu0
    %293 = vmatprep.mubr.f32.mxu0 0.0
    %294 = vmatmul.mubr.f32.gmra.mxu0 %v214
    %v295 = vpop.f32.mrf.mxu0
    %v296 = vadd.f32 %v199, %v295
    %v297 = vpop.f32.mrf.mxu0
    %298 = vmatprep.mubr.f32.mxu0 0.0
    %299 = vmatmul.mubr.f32.gmra.mxu0 %v217
    %v300 = vpop.f32.mrf.mxu0
    %v301 = vadd.f32 %v204, %v300
    %v302 = vpop.f32.mrf.mxu0
    %303 = vdwg.mxu0
    %v304 = vmax.f32 %v286, 0.0
    %v305 = vmax.f32 %v291, 0.0
    %v306 = vmax.f32 %v296, 0.0
    %v307 = vmax.f32 %v301, 0.0
    %s308 = scalar_lea.vmem %s3, 32
    %v309 = vld [vmem:[%s308] sm:$0xff]
    %v310 = vld [vmem:[%s308 + $0x8] sm:$0xff]
    %v311 = vld [vmem:[%s308 + $0x10] sm:$0xff]
    %v312 = vld [vmem:[%s308 + $0x18] sm:$0xff]
    %s313 = scalar_lea.vmem %s4, 32
    %v314 = vld [vmem:[%s313] sm:$0xff]
    %v315 = vld [vmem:[%s313 + $0x8] sm:$0xff]
    %v316 = vld [vmem:[%s313 + $0x10] sm:$0xff]
    %v317 = vld [vmem:[%s313 + $0x18] sm:$0xff]
    %319 = vset.pattern.permute.xlu0 0
    %320 = vperm.xlu0 %319, %v314
    %v321 = vpop.permute.xlu0 %320
    %324 = vset.pattern.permute.xlu0 0
    %325 = vperm.xlu0 %324, %v315
    %v326 = vpop.permute.xlu0 %325
    %329 = vset.pattern.permute.xlu0 0
    %330 = vperm.xlu0 %329, %v316
    %v331 = vpop.permute.xlu0 %330
    %334 = vset.pattern.permute.xlu0 0
    %335 = vperm.xlu0 %334, %v317
    %v336 = vpop.permute.xlu0 %335
    %v339 = vsel %vm206, %v309, 0
    %v342 = vsel %vm206, %v310, 0
    %v345 = vsel %vm206, %v311, 0
    %v348 = vsel %vm206, %v312, 0
    %350 = vmatprep.subr.mxu0 0.0
    %351 = vmatpush1.msra.mxu0 0.0
    %352 = vmatprep.subr.mxu0 0.0
    %353 = vmatpush1.msra.mxu0 0.0
    %354 = vmatprep.subr.mxu0 0.0
    %355 = vmatpush1.msra.mxu0 0.0
    %356 = vmatprep.subr.mxu0 0.0
    %357 = vmatpush1.msra.mxu0 0.0
    %358 = vmatprep.subr.mxu0 0.0
    %359 = vmatpush1.msra.mxu0 0.0
    %360 = vmatprep.subr.mxu0 0.0
    %361 = vmatpush1.msra.mxu0 0.0
    %362 = vmatprep.subr.mxu0 0.0
    %363 = vmatpush1.msra.mxu0 0.0
    %364 = vmatprep.subr.mxu0 0.0
    %365 = vmatpush1.msra.mxu0 0.0
    %366 = vmatprep.subr.mxu0 0.0
    %367 = vmatpush1.msra.mxu0 0.0
    %368 = vmatprep.subr.mxu0 0.0
    %369 = vmatpush1.msra.mxu0 0.0
    %370 = vmatprep.subr.mxu0 0.0
    %371 = vmatpush1.msra.mxu0 0.0
    %372 = vmatprep.subr.mxu0 0.0
    %373 = vmatpush1.msra.mxu0 0.0
    %374 = vmatprep.subr.mxu0 0.0
    %375 = vmatpush1.msra.mxu0 %v307
    %376 = vmatprep.subr.mxu0 0.0
    %377 = vmatpush1.msra.mxu0 %v306
    %378 = vmatprep.subr.mxu0 0.0
    %379 = vmatpush1.msra.mxu0 %v305
    %380 = vmatprep.subr.mxu0 0.0
    %381 = vmatpush1.msra.mxu0 %v304
    %382 = vmatprep.subr.mxu0 0.0
    %383 = vmatpush2.msra.mxu0 0.0
    %384 = vmatprep.subr.mxu0 0.0
    %385 = vmatpush2.msra.mxu0 0.0
    %386 = vmatprep.subr.mxu0 0.0
    %387 = vmatpush2.msra.mxu0 0.0
    %388 = vmatprep.subr.mxu0 0.0
    %389 = vmatpush2.msra.mxu0 0.0
    %390 = vmatprep.subr.mxu0 0.0
    %391 = vmatpush2.msra.mxu0 0.0
    %392 = vmatprep.subr.mxu0 0.0
    %393 = vmatpush2.msra.mxu0 0.0
    %394 = vmatprep.subr.mxu0 0.0
    %395 = vmatpush2.msra.mxu0 0.0
    %396 = vmatprep.subr.mxu0 0.0
    %397 = vmatpush2.msra.mxu0 0.0
    %398 = vmatprep.subr.mxu0 0.0
    %399 = vmatpush2.msra.mxu0 0.0
    %400 = vmatprep.subr.mxu0 0.0
    %401 = vmatpush2.msra.mxu0 0.0
    %402 = vmatprep.subr.mxu0 0.0
    %403 = vmatpush2.msra.mxu0 0.0
    %404 = vmatprep.subr.mxu0 0.0
    %405 = vmatpush2.msra.mxu0 0.0
    %406 = vmatprep.subr.mxu0 0.0
    %407 = vmatpush2.msra.mxu0 0.0
    %408 = vmatprep.subr.mxu0 0.0
    %409 = vmatpush2.msra.mxu0 0.0
    %410 = vmatprep.subr.mxu0 0.0
    %411 = vmatpush2.msra.mxu0 0.0
    %412 = vmatprep.subr.mxu0 0.0
    %413 = vmatpush2.msra.mxu0 0.0
    %414 = vmatprep.mubr.f32.mxu0 0.0
    %415 = vmatmul.mubr.f32.gmra.mxu0 %v339
    %v416 = vpop.f32.mrf.mxu0
    %v417 = vadd.f32 %v321, %v416
    %v418 = vpop.f32.mrf.mxu0
    %419 = vmatprep.mubr.f32.mxu0 0.0
    %420 = vmatmul.mubr.f32.gmra.mxu0 %v342
    %v421 = vpop.f32.mrf.mxu0
    %v422 = vadd.f32 %v326, %v421
    %v423 = vpop.f32.mrf.mxu0
    %424 = vmatprep.mubr.f32.mxu0 0.0
    %425 = vmatmul.mubr.f32.gmra.mxu0 %v345
    %v426 = vpop.f32.mrf.mxu0
    %v427 = vadd.f32 %v331, %v426
    %v428 = vpop.f32.mrf.mxu0
    %429 = vmatprep.mubr.f32.mxu0 0.0
    %430 = vmatmul.mubr.f32.gmra.mxu0 %v348
    %v431 = vpop.f32.mrf.mxu0
    %v432 = vadd.f32 %v336, %v431
    %v433 = vpop.f32.mrf.mxu0
    %434 = vdwg.mxu0
    %v435 = vmax.f32 %v417, 0.0
    %v436 = vmax.f32 %v422, 0.0
    %v437 = vmax.f32 %v427, 0.0
    %v438 = vmax.f32 %v432, 0.0
    %s439 = scalar_lea.vmem %s3, 64
    %v440 = vld [vmem:[%s439] sm:$0xff]
    %v441 = vld [vmem:[%s439 + $0x8] sm:$0xff]
    %v442 = vld [vmem:[%s439 + $0x10] sm:$0xff]
    %v443 = vld [vmem:[%s439 + $0x18] sm:$0xff]
    %s444 = scalar_lea.vmem %s4, 64
    %v445 = vld [vmem:[%s444] sm:$0xff]
    %v446 = vld [vmem:[%s444 + $0x8] sm:$0xff]
    %v447 = vld [vmem:[%s444 + $0x10] sm:$0xff]
    %v448 = vld [vmem:[%s444 + $0x18] sm:$0xff]
    %450 = vset.pattern.permute.xlu0 0
    %451 = vperm.xlu0 %450, %v445
    %v452 = vpop.permute.xlu0 %451
    %455 = vset.pattern.permute.xlu0 0
    %456 = vperm.xlu0 %455, %v446
    %v457 = vpop.permute.xlu0 %456
    %460 = vset.pattern.permute.xlu0 0
    %461 = vperm.xlu0 %460, %v447
    %v462 = vpop.permute.xlu0 %461
    %465 = vset.pattern.permute.xlu0 0
    %466 = vperm.xlu0 %465, %v448
    %v467 = vpop.permute.xlu0 %466
    %v470 = vsel %vm206, %v440, 0
    %v473 = vsel %vm206, %v441, 0
    %v476 = vsel %vm206, %v442, 0
    %v479 = vsel %vm206, %v443, 0
    %481 = vmatprep.subr.mxu0 0.0
    %482 = vmatpush1.msra.mxu0 0.0
    %483 = vmatprep.subr.mxu0 0.0
    %484 = vmatpush1.msra.mxu0 0.0
    %485 = vmatprep.subr.mxu0 0.0
    %486 = vmatpush1.msra.mxu0 0.0
    %487 = vmatprep.subr.mxu0 0.0
    %488 = vmatpush1.msra.mxu0 0.0
    %489 = vmatprep.subr.mxu0 0.0
    %490 = vmatpush1.msra.mxu0 0.0
    %491 = vmatprep.subr.mxu0 0.0
    %492 = vmatpush1.msra.mxu0 0.0
    %493 = vmatprep.subr.mxu0 0.0
    %494 = vmatpush1.msra.mxu0 0.0
    %495 = vmatprep.subr.mxu0 0.0
    %496 = vmatpush1.msra.mxu0 0.0
    %497 = vmatprep.subr.mxu0 0.0
    %498 = vmatpush1.msra.mxu0 0.0
    %499 = vmatprep.subr.mxu0 0.0
    %500 = vmatpush1.msra.mxu0 0.0
    %501 = vmatprep.subr.mxu0 0.0
    %502 = vmatpush1.msra.mxu0 0.0
    %503 = vmatprep.subr.mxu0 0.0
    %504 = vmatpush1.msra.mxu0 0.0
    %505 = vmatprep.subr.mxu0 0.0
    %506 = vmatpush1.msra.mxu0 %v438
    %507 = vmatprep.subr.mxu0 0.0
    %508 = vmatpush1.msra.mxu0 %v437
    %509 = vmatprep.subr.mxu0 0.0
    %510 = vmatpush1.msra.mxu0 %v436
    %511 = vmatprep.subr.mxu0 0.0
    %512 = vmatpush1.msra.mxu0 %v435
    %513 = vmatprep.subr.mxu0 0.0
    %514 = vmatpush2.msra.mxu0 0.0
    %515 = vmatprep.subr.mxu0 0.0
    %516 = vmatpush2.msra.mxu0 0.0
    %517 = vmatprep.subr.mxu0 0.0
    %518 = vmatpush2.msra.mxu0 0.0
    %519 = vmatprep.subr.mxu0 0.0
    %520 = vmatpush2.msra.mxu0 0.0
    %521 = vmatprep.subr.mxu0 0.0
    %522 = vmatpush2.msra.mxu0 0.0
    %523 = vmatprep.subr.mxu0 0.0
    %524 = vmatpush2.msra.mxu0 0.0
    %525 = vmatprep.subr.mxu0 0.0
    %526 = vmatpush2.msra.mxu0 0.0
    %527 = vmatprep.subr.mxu0 0.0
    %528 = vmatpush2.msra.mxu0 0.0
    %529 = vmatprep.subr.mxu0 0.0
    %530 = vmatpush2.msra.mxu0 0.0
    %531 = vmatprep.subr.mxu0 0.0
    %532 = vmatpush2.msra.mxu0 0.0
    %533 = vmatprep.subr.mxu0 0.0
    %534 = vmatpush2.msra.mxu0 0.0
    %535 = vmatprep.subr.mxu0 0.0
    %536 = vmatpush2.msra.mxu0 0.0
    %537 = vmatprep.subr.mxu0 0.0
    %538 = vmatpush2.msra.mxu0 0.0
    %539 = vmatprep.subr.mxu0 0.0
    %540 = vmatpush2.msra.mxu0 0.0
    %541 = vmatprep.subr.mxu0 0.0
    %542 = vmatpush2.msra.mxu0 0.0
    %543 = vmatprep.subr.mxu0 0.0
    %544 = vmatpush2.msra.mxu0 0.0
    %545 = vmatprep.mubr.f32.mxu0 0.0
    %546 = vmatmul.mubr.f32.gmra.mxu0 %v470
    %v547 = vpop.f32.mrf.mxu0
    %v548 = vadd.f32 %v452, %v547
    %v549 = vpop.f32.mrf.mxu0
    %550 = vmatprep.mubr.f32.mxu0 0.0
    %551 = vmatmul.mubr.f32.gmra.mxu0 %v473
    %v552 = vpop.f32.mrf.mxu0
    %v553 = vadd.f32 %v457, %v552
    %v554 = vpop.f32.mrf.mxu0
    %555 = vmatprep.mubr.f32.mxu0 0.0
    %556 = vmatmul.mubr.f32.gmra.mxu0 %v476
    %v557 = vpop.f32.mrf.mxu0
    %v558 = vadd.f32 %v462, %v557
    %v559 = vpop.f32.mrf.mxu0
    %560 = vmatprep.mubr.f32.mxu0 0.0
    %561 = vmatmul.mubr.f32.gmra.mxu0 %v479
    %v562 = vpop.f32.mrf.mxu0
    %v563 = vadd.f32 %v467, %v562
    %v564 = vpop.f32.mrf.mxu0
    %565 = vdwg.mxu0
    %v566 = vmax.f32 %v548, 0.0
    %v567 = vmax.f32 %v553, 0.0
    %v568 = vmax.f32 %v558, 0.0
    %v569 = vmax.f32 %v563, 0.0
    %v570 = vld [vmem:[%s5] sm:$0xff]
    %v571 = vld [vmem:[%s5 + $0x8] sm:$0xff]
    %v572 = vld [vmem:[%s5 + $0x10] sm:$0xff]
    %v573 = vld [vmem:[%s5 + $0x18] sm:$0xff]
    %575 = vset.pattern.permute.xlu0 0
    %576 = vperm.xlu0 %575, %v570
    %v577 = vpop.permute.xlu0 %576
    %580 = vset.pattern.permute.xlu0 0
    %581 = vperm.xlu0 %580, %v571
    %v582 = vpop.permute.xlu0 %581
    %585 = vset.pattern.permute.xlu0 0
    %586 = vperm.xlu0 %585, %v572
    %v587 = vpop.permute.xlu0 %586
    %590 = vset.pattern.permute.xlu0 0
    %591 = vperm.xlu0 %590, %v573
    %v592 = vpop.permute.xlu0 %591
    %v594 = vmul.f32 %v566, %v577
    %v595 = vmul.f32 %v567, %v582
    %v596 = vmul.f32 %v568, %v587
    %v597 = vmul.f32 %v569, %v592
    %v598 = vadd.f32 %v594, %v595
    %v599 = vadd.f32 %v598, %v596
    %v600 = vadd.f32 %v599, %v597
    %v601 = vrot.slane %v600, 4
    %v602 = vadd.f32 %v600, %v601
    %v603 = vrot.slane %v602, 2
    %v604 = vadd.f32 %v602, %v603
    %v605 = vrot.slane %v604, 1
    %v606 = vadd.f32 %v604, %v605
    %v607 = vld [vmem:[#allocation2] sm:$0x1]
    %609 = vset.pattern.permute.xlu0 0
    %610 = vperm.xlu0 %609, %v607
    %v611 = vpop.permute.xlu0 %610
    %v613 = vlaneseq
    %v614 = vshrl.u32 %v613, 7
    %v615 = vsub.s32 0, %v614
    %v616 = vrot.slane %v611, %v615
    %v617 = vadd.f32 %v606, %v616
    %618 = vst [vmem:[#allocation3] sm:$0x1] %v617
    // Predicated region
    $region30: #{tpu_custom_call.1} parent=1 // pred_check
      _
    $region31: #{tpu_custom_call.1} parent=1 // pred_check_branch
      %620 = sbr.rel (0) target = $region33
    $region32: #{tpu_custom_call.1} parent=1 // pred_region
      %s622 = ssub.s32 16, 16
      %623 = vsyncadd [#allocation4], %s622
      %s625 = sshll.u32 [#allocation3], 4
      %s626 = int_to_ptr.vmem [resolvable:$true] %s625
      %628 = dma.vmem_to_hbm [thread:$0]  %s626, 16, %s7, [#allocation4]
    $region33: #{tpu_custom_call.1} parent=1 // pred_fallthru
      _
    // Predicated region
    $region34: #{tpu_custom_call.1} parent=1 // pred_check
      _
    $region35: #{tpu_custom_call.1} parent=1 // pred_check_branch
      %630 = sbr.rel (0) target = $region37
    $region36: #{tpu_custom_call.1} parent=1 // pred_region
      %631 = dma.done [#allocation4], 16
    $region37: #{tpu_custom_call.1} parent=1 // pred_fallthru
      _
    %632 = vsyncpa [#allocation4], 1

</llo_original>
